<compile_context>
chip_gen: v7x
topology: tpu7x:2x2x1
jax: 0.10.0
libtpu: 0.0.40
codegen_flags: <defaults>
</compile_context>

<pallas_src>
import jax
import jax.numpy as jnp
import numpy as np
from jax import lax
from jax.experimental import pallas as pl
from jax.experimental.pallas import tpu as pltpu


def _round_up(x, m):
    return ((x + m - 1) // m) * m


def _vmem_capacity_bytes():
    try:
        return int(pltpu.get_tpu_info().vmem_capacity_bytes)
    except Exception:
        return 64 * 1024 * 1024  # conservative fallback (v7x per-core VMEM)


def _build_seqkd(T, N, V_pad, TM, C, steps_per_slice, N_pad, vmem_limit):
    scale = (T * T) / float(N)
    inv_T = 1.0 / float(T)
    apply_inv_t = (float(T) != 1.0)
    need_row_mask = (N_pad != N)

    def kernel(pred_ref, ref_ref, out_ref, acc_ref):
        c = pl.program_id(0)
        i = pl.program_id(1)

        @pl.when(i == 0)
        def _():
            acc_ref[...] = jnp.zeros_like(acc_ref)

        q = pred_ref[...].astype(jnp.float32)
        r = ref_ref[...].astype(jnp.float32)
        if apply_inv_t:
            q = q * inv_T
            r = r * inv_T

        q_shift = q - jnp.max(q, axis=-1, keepdims=True)
        r_shift = r - jnp.max(r, axis=-1, keepdims=True)
        e_q = jnp.exp(q_shift)
        e_r = jnp.exp(r_shift)
        sum_q = jnp.sum(e_q, axis=-1, keepdims=True)
        sum_r = jnp.sum(e_r, axis=-1, keepdims=True)
        # Folded KL per row:
        #   sum_v p*(logp - logq)
        #     = [sum_v e_r*(r_shift - q_shift)] / sum_r + log(sum_q) - log(sum_r)
        num = jnp.sum(e_r * (r_shift - q_shift), axis=-1, keepdims=True)
        per_row = num / sum_r + jnp.log(sum_q) - jnp.log(sum_r)        # (TM, 1)

        if need_row_mask:
            row0 = (c * steps_per_slice + i) * TM
            row_idx = row0 + lax.broadcasted_iota(jnp.int32, (TM, 1), 0)
            per_row = jnp.where(row_idx < N, per_row, 0.0)

        acc_ref[...] += per_row

        @pl.when(i == pl.num_programs(1) - 1)
        def _():
            total = jnp.sum(acc_ref[...]) * scale
            out_ref[...] = jnp.full((8, 128), total, dtype=jnp.float32)

    return pl.pallas_call(
        kernel,
        out_shape=jax.ShapeDtypeStruct((C * 8, 128), jnp.float32),
        grid_spec=pltpu.PrefetchScalarGridSpec(
            num_scalar_prefetch=0,
            grid=(C, steps_per_slice),
            in_specs=[
                pl.BlockSpec((TM, V_pad), lambda c, i: (c * steps_per_slice + i, 0)),
                pl.BlockSpec((TM, V_pad), lambda c, i: (c * steps_per_slice + i, 0)),
            ],
            out_specs=pl.BlockSpec((8, 128), lambda c, i: (c, 0)),
            scratch_shapes=[pltpu.VMEM((TM, 1), jnp.float32)],
        ),
        compiler_params=pltpu.CompilerParams(
            dimension_semantics=("parallel", "arbitrary"),
            vmem_limit_bytes=int(vmem_limit),
        ),
    )


def _neg_pad_value(dtype):
    # very negative logit: softmax prob underflows -> padded lanes contribute 0
    return -1e4 if jnp.finfo(dtype).max < 1e6 else -1e30


def seqkd_loss(prediction_logits, ref_logits, T=1.0):
    """prediction_logits, ref_logits: (B, S, V) -> scalar loss (SeqKD.forward)."""
    B, S, V = ref_logits.shape
    N = B * S
    pred2d = prediction_logits.reshape(N, V)   # keep native dtype (no f32 up-cast)
    ref2d = ref_logits.reshape(N, V)

    # Pad vocab (lane) axis to a multiple of 128 with very negative logits.
    V_pad = _round_up(V, 128)
    if V_pad != V:
        pred2d = jnp.pad(pred2d, ((0, 0), (0, V_pad - V)),
                         constant_values=_neg_pad_value(pred2d.dtype))
        ref2d = jnp.pad(ref2d, ((0, 0), (0, V_pad - V)),
                        constant_values=_neg_pad_value(ref2d.dtype))
    # TODO(synk): for very large V (>=64k) add a vocab grid axis with an online
    # (flash-softmax style) max/sum accumulator instead of full-row tiles.

    # Row tile size from per-chip VMEM capacity (so it self-halves on v7x).
    in_bytes = max(jnp.dtype(pred2d.dtype).itemsize, jnp.dtype(ref2d.dtype).itemsize)
    capacity = _vmem_capacity_bytes()
    budget = capacity // 3
    # 2 inputs x 2 pipeline buffers + headroom for f32 softmax intermediates
    per_row_bytes = 2 * 2 * V_pad * in_bytes + 8 * V_pad * 4
    TM = int(max(8, min(512, (budget // per_row_bytes) // 8 * 8)))
    TM = min(TM, _round_up(N, 8))

    steps_total = -(-N // TM)
    C = 2 if steps_total >= 2 else 1          # split row range across TensorCores
    steps_per_slice = -(-steps_total // C)
    N_pad = C * steps_per_slice * TM
    if N_pad != N:
        pred2d = jnp.pad(pred2d, ((0, N_pad - N), (0, 0)))
        ref2d = jnp.pad(ref2d, ((0, N_pad - N), (0, 0)))

    needed = 2 * 2 * TM * V_pad * in_bytes + 8 * TM * V_pad * 4 + (2 << 20)
    vmem_limit = min(int(capacity * 0.9), max(needed, 32 << 20))

    call = _build_seqkd(float(T), N, V_pad, TM, C, steps_per_slice, N_pad, vmem_limit)
    out = call(pred2d, ref2d)                 # (C*8, 128): block c filled with its partial
    return jnp.sum(out.reshape(C, 8, 128)[:, 0, 0])


def _reference_seqkd(pred, ref, T=1.0):
    V = ref.shape[-1]
    logq = jax.nn.log_softmax(pred / T, axis=-1).reshape(-1, V)
    logp = jax.nn.log_softmax(ref / T, axis=-1).reshape(-1, V)
    p = jnp.exp(logp)
    return jnp.sum(p * (logp - logq)) / logq.shape[0] * (T * T)


if __name__ == "__main__":
    B, S, V = 2, 8, 128

    key = jax.random.PRNGKey(0)
    k1, k2 = jax.random.split(key)
    pred_logits = jax.random.normal(k1, (B, S, V), dtype=jnp.float32)
    ref_logits = jax.random.normal(k2, (B, S, V), dtype=jnp.float32)

    # primary case: f32 inputs, T = 1
    loss = jax.block_until_ready(seqkd_loss(pred_logits, ref_logits, T=1.0))
    ref = jax.block_until_ready(_reference_seqkd(pred_logits, ref_logits, T=1.0))
    assert np.allclose(np.asarray(loss), np.asarray(ref), rtol=1e-4, atol=1e-5), (loss, ref)

    # bf16 inputs with T != 1 (exercises native-dtype path + temperature scaling)
    pred_bf = pred_logits.astype(jnp.bfloat16)
    ref_bf = ref_logits.astype(jnp.bfloat16)
    loss2 = jax.block_until_ready(seqkd_loss(pred_bf, ref_bf, T=2.0))
    ref2 = jax.block_until_ready(
        _reference_seqkd(pred_bf.astype(jnp.float32), ref_bf.astype(jnp.float32), T=2.0))
    assert np.allclose(np.asarray(loss2), np.asarray(ref2), rtol=1e-3, atol=1e-5), (loss2, ref2)

    print("KERNEL_OK")
</pallas_src>

<mosaic_0001>
module attributes {stable_mosaic.version = 11 : i64} {
  func.func @kernel(%arg0: i32, %arg1: i32, %arg2: memref<16x128xf32, #tpu.memory_space<vmem>>, %arg3: memref<16x128xf32, #tpu.memory_space<vmem>>, %arg4: memref<8x128xf32, #tpu.memory_space<vmem>>, %arg5: memref<16x1xf32, #tpu.memory_space<vmem>>) attributes {dimension_semantics = [#tpu.dimension_semantics<parallel>, #tpu.dimension_semantics<arbitrary>], iteration_bounds = array<i64: 1, 1>, scalar_prefetch = 0 : i64, scratch_operands = 1 : i64, tpu.core_type = #tpu.core_type<tc>, window_params = [{transform_indices = @transform_0, window_bounds = array<i64: 16, 128>}, {transform_indices = @transform_1, window_bounds = array<i64: 16, 128>}, {transform_indices = @transform_2, window_bounds = array<i64: 8, 128>}]} {
    %c0_i32 = arith.constant 0 : i32
    %0 = arith.cmpi eq, %arg1, %c0_i32 : i32
    %1 = arith.extui %0 : i1 to i32
    %c0_i32_0 = arith.constant 0 : i32
    %2 = arith.cmpi ne, %1, %c0_i32_0 : i32
    scf.if %2 {
      %cst_14 = arith.constant 0.000000e+00 : f32
      %34 = vector.broadcast %cst_14 : f32 to vector<16x1xf32>
      %c0_15 = arith.constant 0 : index
      %c0_16 = arith.constant 0 : index
      %35 = vector.load %arg5[%c0_15, %c0_16] : memref<16x1xf32, #tpu.memory_space<vmem>>, vector<16x1xf32>
      tpu.vector_store %arg5[%c0_15, %c0_16], %34 {strides = array<i32>} : memref<16x1xf32, #tpu.memory_space<vmem>>, vector<16x1xf32>,
    } else {
    }
    %c0 = arith.constant 0 : index
    %c0_1 = arith.constant 0 : index
    %3 = vector.load %arg2[%c0, %c0_1] : memref<16x128xf32, #tpu.memory_space<vmem>>, vector<16x128xf32>
    %c0_2 = arith.constant 0 : index
    %c0_3 = arith.constant 0 : index
    %4 = vector.load %arg3[%c0_2, %c0_3] : memref<16x128xf32, #tpu.memory_space<vmem>>, vector<16x128xf32>
    %cst = arith.constant dense<0xFF800000> : vector<16xf32>
    %5 = vector.multi_reduction <maximumf>, %3, %cst [1] : vector<16x128xf32> to vector<16xf32>
    %6 = vector.shape_cast %5 : vector<16xf32> to vector<16x1xf32>
    %7 = vector.broadcast %6 : vector<16x1xf32> to vector<16x128xf32>
    %8 = arith.subf %3, %7 : vector<16x128xf32>
    %cst_4 = arith.constant dense<0xFF800000> : vector<16xf32>
    %9 = vector.multi_reduction <maximumf>, %4, %cst_4 [1] : vector<16x128xf32> to vector<16xf32>
    %10 = vector.shape_cast %9 : vector<16xf32> to vector<16x1xf32>
    %11 = vector.broadcast %10 : vector<16x1xf32> to vector<16x128xf32>
    %12 = arith.subf %4, %11 : vector<16x128xf32>
    %13 = math.exp %8 : vector<16x128xf32>
    %14 = math.exp %12 : vector<16x128xf32>
    %cst_5 = arith.constant dense<0.000000e+00> : vector<16xf32>
    %15 = vector.multi_reduction <add>, %13, %cst_5 [1] : vector<16x128xf32> to vector<16xf32>
    %16 = vector.shape_cast %15 : vector<16xf32> to vector<16x1xf32>
    %cst_6 = arith.constant dense<0.000000e+00> : vector<16xf32>
    %17 = vector.multi_reduction <add>, %14, %cst_6 [1] : vector<16x128xf32> to vector<16xf32>
    %18 = vector.shape_cast %17 : vector<16xf32> to vector<16x1xf32>
    %19 = arith.subf %12, %8 : vector<16x128xf32>
    %20 = arith.mulf %14, %19 : vector<16x128xf32>
    %cst_7 = arith.constant dense<0.000000e+00> : vector<16xf32>
    %21 = vector.multi_reduction <add>, %20, %cst_7 [1] : vector<16x128xf32> to vector<16xf32>
    %22 = vector.shape_cast %21 : vector<16xf32> to vector<16x1xf32>
    %23 = arith.divf %22, %18 : vector<16x1xf32>
    %24 = math.log %16 : vector<16x1xf32>
    %25 = arith.addf %23, %24 : vector<16x1xf32>
    %26 = math.log %18 : vector<16x1xf32>
    %27 = arith.subf %25, %26 : vector<16x1xf32>
    %c0_8 = arith.constant 0 : index
    %c0_9 = arith.constant 0 : index
    %28 = vector.load %arg5[%c0_8, %c0_9] : memref<16x1xf32, #tpu.memory_space<vmem>>, vector<16x1xf32>
    %29 = arith.addf %28, %27 : vector<16x1xf32>
    %c0_10 = arith.constant 0 : index
    %c0_11 = arith.constant 0 : index
    %30 = vector.load %arg5[%c0_10, %c0_11] : memref<16x1xf32, #tpu.memory_space<vmem>>, vector<16x1xf32>
    tpu.vector_store %arg5[%c0_10, %c0_11], %29 {strides = array<i32>} : memref<16x1xf32, #tpu.memory_space<vmem>>, vector<16x1xf32>,
    %c0_i32_12 = arith.constant 0 : i32
    %31 = arith.cmpi eq, %arg1, %c0_i32_12 : i32
    %32 = arith.extui %31 : i1 to i32
    %c0_i32_13 = arith.constant 0 : i32
    %33 = arith.cmpi ne, %32, %c0_i32_13 : i32
    scf.if %33 {
      %c0_14 = arith.constant 0 : index
      %c0_15 = arith.constant 0 : index
      %34 = vector.load %arg5[%c0_14, %c0_15] : memref<16x1xf32, #tpu.memory_space<vmem>>, vector<16x1xf32>
      %35 = vector.shape_cast %34 : vector<16x1xf32> to vector<1x16x1xf32>
      %cst_16 = arith.constant dense<0.000000e+00> : vector<1xf32>
      %36 = vector.multi_reduction <add>, %35, %cst_16 [1, 2] : vector<1x16x1xf32> to vector<1xf32>
      %37 = vector.shape_cast %36 : vector<1xf32> to vector<1x1x1xf32>
      %38 = vector.extract %37[0, 0, 0] : f32 from vector<1x1x1xf32>
      %cst_17 = arith.constant 6.250000e-02 : f32
      %39 = arith.mulf %38, %cst_17 : f32
      %40 = vector.broadcast %39 : f32 to vector<8x128xf32>
      %c0_18 = arith.constant 0 : index
      %c0_19 = arith.constant 0 : index
      %41 = vector.load %arg4[%c0_18, %c0_19] : memref<8x128xf32, #tpu.memory_space<vmem>>, vector<8x128xf32>
      tpu.vector_store %arg4[%c0_18, %c0_19], %40 {strides = array<i32>} : memref<8x128xf32, #tpu.memory_space<vmem>>, vector<8x128xf32>,
    } else {
    }
    return
  }
  func.func @transform_0(%arg0: i32, %arg1: i32) -> (i32, i32) {
    %c1_i32 = arith.constant 1 : i32
    %0 = arith.muli %arg0, %c1_i32 : i32
    %1 = arith.addi %0, %arg1 : i32
    %c0_i32 = arith.constant 0 : i32
    %c0_i32_0 = arith.constant 0 : i32
    return %1, %c0_i32 : i32, i32
  }
  func.func @transform_1(%arg0: i32, %arg1: i32) -> (i32, i32) {
    %c1_i32 = arith.constant 1 : i32
    %0 = arith.muli %arg0, %c1_i32 : i32
    %1 = arith.addi %0, %arg1 : i32
    %c0_i32 = arith.constant 0 : i32
    %c0_i32_0 = arith.constant 0 : i32
    return %1, %c0_i32 : i32, i32
  }
  func.func @transform_2(%arg0: i32, %arg1: i32) -> (i32, i32) {
    %c0_i32 = arith.constant 0 : i32
    %c0_i32_0 = arith.constant 0 : i32
    return %arg0, %c0_i32 : i32, i32
  }
}

</mosaic_0001>

<llo_original>
// kernel: tpu_custom_call.1
$region0: #{tpu_custom_call.1}
  #allocation0 [shape = 'u32[]', space=smem, size = 0x4, offset = 0x4, fixed_abs, tag = 'smem constant byte address 0x4 - core index']
  #allocation1 [shape = 'u32[144,128]{1,0:T(1,128)}', space=vmem, size = 0x12000, scoped, tag = 'internal scratch']
  #allocation2 [shape = 'f32[16,1]{1,0:T(8,128)}', space=vmem, size = 0x2000, scoped, tag = 'scratch operand']
  %s0 = inlined_call_operand.hbm [shape: f32[16,128], index: 0, kind: input, shape index: {}]
  %s1 = inlined_call_operand.hbm [shape: f32[16,128], index: 1, kind: input, shape index: {}]
  %s2 = inlined_call_operand.hbm [shape: f32[8,128], index: 2, kind: output, shape index: {}]
  %s3 = sld [smem:[#allocation0]]
  $region34: #{tpu_custom_call.1} parent=0
    _
  %s5 = ssub.s32 1, %s3
  %s6 = scalar_select 0, %s5, %s3
  $region1: #{tpu_custom_call.1} parent=0
    #allocation3 [shape = 'u8[8192]{0}', space=vmem, size = 0x2000, scoped, tag = 'input window, operand 0, single buffered']
    #allocation4 [shape = 's32[1]{0}', space=sflag, size = 0x4, scoped, tag = 'scoped memory for tpu_custom_call.1']
    #allocation5 [shape = 's32[1]{0}', space=sflag, size = 0x4, scoped, tag = 'scoped memory for tpu_custom_call.1']
    #allocation6 [shape = 'u8[8192]{0}', space=vmem, size = 0x2000, scoped, tag = 'input window, operand 1, single buffered']
    #allocation7 [shape = 's32[1]{0}', space=sflag, size = 0x4, scoped, tag = 'scoped memory for tpu_custom_call.1']
    #allocation8 [shape = 'u8[4096]{0}', space=vmem, size = 0x1000, scoped, tag = 'output window, operand 0, single buffered']
    %7 = vsyncpa [#allocation4], 0
    %8 = vsyncpa [#allocation7], 0
    %9 = vsyncpa [#allocation5], 0
    // Predicated region
    $region2: #{tpu_custom_call.1} parent=1 // pred_check
      _
    $region3: #{tpu_custom_call.1} parent=1 // pred_check_branch
      %11 = sbr.rel (0) target = $region5
    $region4: #{tpu_custom_call.1} parent=1 // pred_region
      %s12 = sadd.s32 0, 0
      %s13 = smul.u32 2, %s12
      %s15 = ssub.s32 256, 256
      %16 = vsyncadd [#allocation4], %s15
      %s17 = smul.addr %s13, 128
      %s18 = scalar_lea.hbm %s0, %s17
      %s19 = sshll.u32 [#allocation3], 4
      %s20 = int_to_ptr.vmem [resolvable:$true] %s19
      %25 = dma.hbm_to_vmem [thread:$0]  %s18, 256, %s20, [#allocation4], 128, 128, 8
    $region5: #{tpu_custom_call.1} parent=1 // pred_fallthru
      _
    // Predicated region
    $region6: #{tpu_custom_call.1} parent=1 // pred_check
      _
    $region7: #{tpu_custom_call.1} parent=1 // pred_check_branch
      %27 = sbr.rel (0) target = $region9
    $region8: #{tpu_custom_call.1} parent=1 // pred_region
      %s28 = sadd.s32 0, 0
      %s29 = smul.u32 2, %s28
      %s31 = ssub.s32 256, 256
      %32 = vsyncadd [#allocation7], %s31
      %s33 = smul.addr %s29, 128
      %s34 = scalar_lea.hbm %s1, %s33
      %s35 = sshll.u32 [#allocation6], 4
      %s36 = int_to_ptr.vmem [resolvable:$true] %s35
      %41 = dma.hbm_to_vmem [thread:$0]  %s34, 256, %s36, [#allocation7], 128, 128, 8
    $region9: #{tpu_custom_call.1} parent=1 // pred_fallthru
      _
    // Predicated region
    $region10: #{tpu_custom_call.1} parent=1 // pred_check
      _
    $region11: #{tpu_custom_call.1} parent=1 // pred_check_branch
      %43 = sbr.rel (0) target = $region13
    $region12: #{tpu_custom_call.1} parent=1 // pred_region
      %44 = dma.done [#allocation4], 256
    $region13: #{tpu_custom_call.1} parent=1 // pred_fallthru
      _
    // Predicated region
    $region14: #{tpu_custom_call.1} parent=1 // pred_check
      _
    $region15: #{tpu_custom_call.1} parent=1 // pred_check_branch
      %46 = sbr.rel (0) target = $region17
    $region16: #{tpu_custom_call.1} parent=1 // pred_region
      %47 = dma.done [#allocation7], 256
    $region17: #{tpu_custom_call.1} parent=1 // pred_fallthru
      _
    %s48 = sadd.s32 0, 0
    %s49 = smul.u32 2, %s48
    %s50 = sadd.s32 0, 0
    %s51 = smul.u32 2, %s50
    %p52 = scmp.eq.s32.totalorder 0, 0
    // Predicated region
    $region18: #{tpu_custom_call.1} parent=1 // pred_check
      %p53 = pneg %p52
    $region19: #{tpu_custom_call.1} parent=1 // pred_check_branch
      %55 = sbr.rel (%p53) target = $region21
    $region20: #{tpu_custom_call.1} parent=1 // pred_region
      %vm56 = vcmask 7168
      %57 = vst.msk [vmem:[#allocation2] sm:$0xff] %vm56, 0.0
      %58 = vst.msk [vmem:[#allocation2 + $0x8] sm:$0xff] %vm56, 0.0
    $region21: #{tpu_custom_call.1} parent=1 // pred_fallthru
      _
    %v59 = vld [vmem:[#allocation3] sm:$0xff]
    %v60 = vld [vmem:[#allocation3 + $0x8] sm:$0xff]
    %v61 = vld [vmem:[#allocation6] sm:$0xff]
    %v62 = vld [vmem:[#allocation6 + $0x8] sm:$0xff]
    %63 = vmax.xlane.f32.xlu0 %v59
    %v64 = vpop.xlane.xlu0 %63
    %65 = vmax.xlane.f32.xlu0 %v60
    %v66 = vpop.xlane.xlu0 %65
    %v67 = vsub.f32 %v59, %v64
    %v68 = vsub.f32 %v60, %v66
    %69 = vmax.xlane.f32.xlu0 %v61
    %v70 = vpop.xlane.xlu0 %69
    %71 = vmax.xlane.f32.xlu0 %v62
    %v72 = vpop.xlane.xlu0 %71
    %v73 = vsub.f32 %v61, %v70
    %v74 = vsub.f32 %v62, %v72
    %v75 = vmul.f32 %v67, 1.442695
    %v76 = vpow.pop %v75
    %v77 = vmul.f32 %v68, 1.442695
    %v78 = vpow.pop %v77
    %v79 = vmul.f32 %v73, 1.442695
    %v80 = vpow.pop %v79
    %v81 = vmul.f32 %v74, 1.442695
    %v82 = vpow.pop %v81
    %83 = vadd.xlane.f32.xlu0 %v76
    %v84 = vpop.xlane.xlu0 %83
    %85 = vadd.xlane.f32.xlu0 %v78
    %v86 = vpop.xlane.xlu0 %85
    %87 = vadd.xlane.f32.xlu0 %v80
    %v88 = vpop.xlane.xlu0 %87
    %89 = vadd.xlane.f32.xlu0 %v82
    %v90 = vpop.xlane.xlu0 %89
    %v91 = vsub.f32 %v73, %v67
    %v92 = vsub.f32 %v74, %v68
    %v93 = vmul.f32 %v80, %v91
    %v94 = vmul.f32 %v82, %v92
    %95 = vadd.xlane.f32.xlu0 %v93
    %v96 = vpop.xlane.xlu0 %95
    %97 = vadd.xlane.f32.xlu0 %v94
    %v98 = vpop.xlane.xlu0 %97
    %v99 = vrcp.pop %v88
    %v100 = vmul.f32 %v96, %v99
    %v101 = vrcp.pop %v90
    %v102 = vmul.f32 %v98, %v101
    %v103 = vlog2.pop %v84
    %v104 = vmul.f32 %v103, 0.6931472
    %v105 = vlog2.pop %v86
    %v106 = vmul.f32 %v105, 0.6931472
    %v107 = vadd.f32 %v100, %v104
    %v108 = vadd.f32 %v102, %v106
    %v109 = vlog2.pop %v88
    %v110 = vmul.f32 %v109, 0.6931472
    %v111 = vlog2.pop %v90
    %v112 = vmul.f32 %v111, 0.6931472
    %v113 = vsub.f32 %v107, %v110
    %v114 = vsub.f32 %v108, %v112
    %v115 = vld [vmem:[#allocation2] sm:$0xff]
    %v116 = vld [vmem:[#allocation2 + $0x8] sm:$0xff]
    %v117 = vadd.f32 %v115, %v113
    %v118 = vadd.f32 %v116, %v114
    %vm119 = vcmask 7168
    %120 = vst.msk [vmem:[#allocation2] sm:$0xff] %vm119, %v117
    %121 = vst.msk [vmem:[#allocation2 + $0x8] sm:$0xff] %vm119, %v118
    // Predicated region
    $region22: #{tpu_custom_call.1} parent=1 // pred_check
      %p122 = pneg %p52
    $region23: #{tpu_custom_call.1} parent=1 // pred_check_branch
      %124 = sbr.rel (%p122) target = $region25
    $region24: #{tpu_custom_call.1} parent=1 // pred_region
      %v125 = vld [vmem:[#allocation2] sm:$0xff]
      %v126 = vld [vmem:[#allocation2 + $0x8] sm:$0xff]
      %v127 = vsel %vm119, %v125, 0.0
      %v128 = vsel %vm119, %v126, 0.0
      %v129 = vadd.f32 %v127, %v128
      %130 = vadd.xlane.f32.xlu0 %v129
      %v131 = vpop.xlane.xlu0 %130
      %v132 = vrot.slane %v131, 4
      %v133 = vadd.f32 %v131, %v132
      %v134 = vrot.slane %v133, 2
      %v135 = vadd.f32 %v133, %v134
      %v136 = vrot.slane %v135, 1
      %v137 = vadd.f32 %v135, %v136
      %s138 = vtos %v137
      %s139 = smul.f32 %s138, 0.0625
      %v140 = vstv %s139
      %141 = vst [vmem:[#allocation8] sm:$0xff] %v140
    $region25: #{tpu_custom_call.1} parent=1 // pred_fallthru
      _
    // Predicated region
    $region26: #{tpu_custom_call.1} parent=1 // pred_check
      _
    $region27: #{tpu_custom_call.1} parent=1 // pred_check_branch
      %143 = sbr.rel (0) target = $region29
    $region28: #{tpu_custom_call.1} parent=1 // pred_region
      %s145 = ssub.s32 128, 128
      %146 = vsyncadd [#allocation5], %s145
      %s148 = sshll.u32 [#allocation8], 4
      %s149 = int_to_ptr.vmem [resolvable:$true] %s148
      %151 = dma.vmem_to_hbm [thread:$0]  %s149, 128, %s2, [#allocation5]
    $region29: #{tpu_custom_call.1} parent=1 // pred_fallthru
      _
    // Predicated region
    $region30: #{tpu_custom_call.1} parent=1 // pred_check
      _
    $region31: #{tpu_custom_call.1} parent=1 // pred_check_branch
      %153 = sbr.rel (0) target = $region33
    $region32: #{tpu_custom_call.1} parent=1 // pred_region
      %154 = dma.done [#allocation5], 128
    $region33: #{tpu_custom_call.1} parent=1 // pred_fallthru
      _
    %155 = vsyncpa [#allocation4], 1
    %156 = vsyncpa [#allocation7], 1
    %157 = vsyncpa [#allocation5], 1

</llo_original>
